<compile_context>
chip_gen: v7x
topology: tpu7x:2x2x1
jax: 0.10.0
libtpu: 0.0.40
codegen_flags: <defaults>
</compile_context>

<pallas_src>
import jax
import jax.numpy as jnp
from jax.experimental import pallas as pl
from jax.experimental.pallas import tpu as pltpu

EPS = 1e-5


def _ln_linear_kernel(x_ref, m_ref, w_ref, b_ref, o_ref):
    # x_ref : (TM, P*C4)        P tokens packed per row (channels concatenated)
    # m_ref : (P*C4, P*C4)      block-diagonal group-averaging matrix (f32)
    # w_ref : (P*C4, P*C_out)   block-diagonal gamma-fused Linear weight (f32)
    # b_ref : (1, P*C_out)      beta-fused bias, tiled per token group (f32)
    # o_ref : (TM, P*C_out)
    x = x_ref[...].astype(jnp.float32)
    m = m_ref[...]
    mean = jnp.dot(x, m, preferred_element_type=jnp.float32)          # per-group mean
    c = x - mean
    var = jnp.dot(c * c, m, preferred_element_type=jnp.float32)       # per-group var
    xn = c * jax.lax.rsqrt(var + EPS)
    y = jnp.dot(xn, w_ref[...], preferred_element_type=jnp.float32)
    o_ref[...] = (y + b_ref[...]).astype(o_ref.dtype)


def _pick_tile_rows(n_rows, target):
    """Largest divisor of n_rows that is a multiple of 8, <= target, preferring grid>=2."""
    target = max(1, min(target, n_rows))
    best = None
    for d in range(target, 7, -1):
        if n_rows % d == 0 and d % 8 == 0:
            if n_rows // d >= 2:
                return d
            if best is None:
                best = d
    return best if best is not None else n_rows


@jax.jit
def patch_splitting(x, ln_weight, ln_bias, lin_weight):
    """x: (B, C, H, W) NCHW. Returns (B, C//2, 2H, 2W)."""
    B, C, H, W = x.shape
    assert C % 4 == 0
    C4 = C // 4
    C_out = C // 2

    # --- glue: einops 'B (C C1 C2) H W -> B (H C1) (W C2) C' (XLA transpose) ---
    xr = x.reshape(B, C4, 2, 2, H, W)            # (B, c, c1, c2, H, W)
    xr = jnp.transpose(xr, (0, 4, 2, 5, 3, 1))   # (B, H, c1, W, c2, c)
    xr = xr.reshape(B, 2 * H, 2 * W, C4)         # (B, 2H, 2W, C4)

    n_tok = B * 2 * H * 2 * W                    # always a multiple of 4

    # Packing factor: pack P consecutive tokens per kernel row so the output
    # last dim is lane-dense (>=128 lanes when possible).
    if C_out >= 128:
        P = 1
    elif C_out >= 64:
        P = 2
    else:
        P = 4
    assert n_tok % P == 0
    R = n_tok // P                               # packed rows (raw reshape, no copy)
    tokens_packed = xr.reshape(R, P * C4)

    # --- fused parameters (f32) ---
    f32 = jnp.float32
    w_t = lin_weight.astype(f32).T                               # (C4, C_out)
    w_g = ln_weight.astype(f32)[:, None] * w_t                   # gamma folded in
    w_bd = jnp.kron(jnp.eye(P, dtype=f32), w_g)                  # (P*C4, P*C_out)
    m_avg = jnp.kron(jnp.eye(P, dtype=f32),
                     jnp.full((C4, C4), 1.0 / C4, dtype=f32))    # (P*C4, P*C4)
    b_lin = ln_bias.astype(f32) @ w_t                            # (C_out,)
    bias_t = jnp.tile(b_lin, P).reshape(1, P * C_out)            # (1, P*C_out)

    # --- tile sizing: big, divisor of R, VMEM-safe on all generations ---
    itemsize = x.dtype.itemsize
    bytes_per_token = (C4 + C_out) * itemsize                    # in + out per token
    max_tokens = max(P, min(16384, (8 * 1024 * 1024) // (2 * bytes_per_token)))
    tm = _pick_tile_rows(R, max_tokens // P)
    grid = (R // tm,)

    lanes_in = P * C4
    lanes_out = P * C_out
    flops = R * (2 * lanes_in * lanes_in * 2 + 2 * lanes_in * lanes_out)
    transcendentals = R * lanes_in
    bytes_accessed = (
        R * lanes_in * itemsize
        + R * lanes_out * itemsize
        + (lanes_in * lanes_in + lanes_in * lanes_out + lanes_out) * 4
    )

    out_packed = pl.pallas_call(
        _ln_linear_kernel,
        out_shape=jax.ShapeDtypeStruct((R, lanes_out), x.dtype),
        grid_spec=pltpu.PrefetchScalarGridSpec(
            num_scalar_prefetch=0,
            grid=grid,
            in_specs=[
                pl.BlockSpec((tm, lanes_in), lambda i: (i, 0)),
                pl.BlockSpec((lanes_in, lanes_in), lambda i: (0, 0)),
                pl.BlockSpec((lanes_in, lanes_out), lambda i: (0, 0)),
                pl.BlockSpec((1, lanes_out), lambda i: (0, 0)),
            ],
            out_specs=pl.BlockSpec((tm, lanes_out), lambda i: (i, 0)),
        ),
        compiler_params=pltpu.CompilerParams(
            dimension_semantics=("parallel",),
        ),
        cost_estimate=pl.CostEstimate(
            flops=flops,
            transcendentals=transcendentals,
            bytes_accessed=bytes_accessed,
        ),
    )(tokens_packed, m_avg, w_bd, bias_t)

    # Unpack (raw reshape, free), then PyTorch's .view(B, C, H, W) on contiguous
    # BHWC data == raw reshape.
    out_bhwc = out_packed.reshape(B, 2 * H, 2 * W, C_out)
    return out_bhwc.reshape(B, C_out, 2 * H, 2 * W)


def _reference(x, ln_weight, ln_bias, lin_weight):
    """Pure-JAX reference matching the PyTorch forward."""
    B, C, H, W = x.shape
    C4, C_out = C // 4, C // 2
    xr = x.reshape(B, C4, 2, 2, H, W)
    xr = jnp.transpose(xr, (0, 4, 2, 5, 3, 1)).reshape(B, 2 * H, 2 * W, C4)
    mean = jnp.mean(xr, axis=-1, keepdims=True)
    var = jnp.mean((xr - mean) ** 2, axis=-1, keepdims=True)
    xn = (xr - mean) / jnp.sqrt(var + EPS) * ln_weight + ln_bias
    y = jnp.einsum("bhwc,oc->bhwo", xn, lin_weight)
    return y.reshape(B, C_out, 2 * H, 2 * W)


if __name__ == "__main__":
    key = jax.random.PRNGKey(0)
    B, dim, H, W = 2, 64, 8, 8          # C = dim = 64 -> C4 = 16, C_out = 32
    k_x, k_w, k_g, k_b = jax.random.split(key, 4)

    x = jax.random.normal(k_x, (B, dim, H, W), dtype=jnp.float32)

    # Non-trivial LN affine so the gamma/beta fusion path is actually exercised.
    ln_weight = 1.0 + 0.1 * jax.random.normal(k_g, (dim // 4,), dtype=jnp.float32)
    ln_bias = 0.1 * jax.random.normal(k_b, (dim // 4,), dtype=jnp.float32)
    # Linear weight shape (out_features, in_features), bias=False.
    lin_weight = (
        jax.random.normal(k_w, (dim // 2, dim // 4), dtype=jnp.float32) * 0.02
    )

    out = patch_splitting(x, ln_weight, ln_bias, lin_weight)
    jax.block_until_ready(out)

    ref = _reference(x, ln_weight, ln_bias, lin_weight)
    assert out.shape == (B, dim // 2, 2 * H, 2 * W), out.shape
    max_err = float(jnp.max(jnp.abs(out - ref)))
    assert jnp.allclose(out, ref, atol=1e-4, rtol=1e-4), max_err
    print("KERNEL_OK")
</pallas_src>

<mosaic_0001>
module attributes {stable_mosaic.version = 11 : i64} {
  func.func @_ln_linear_kernel(%arg0: i32, %arg1: memref<64x64xf32, #tpu.memory_space<vmem>>, %arg2: memref<64x64xf32, #tpu.memory_space<vmem>>, %arg3: memref<64x128xf32, #tpu.memory_space<vmem>>, %arg4: memref<1x128xf32, #tpu.memory_space<vmem>>, %arg5: memref<64x128xf32, #tpu.memory_space<vmem>>) attributes {dimension_semantics = [#tpu.dimension_semantics<parallel>], iteration_bounds = array<i64: 2>, scalar_prefetch = 0 : i64, scratch_operands = 0 : i64, tpu.core_type = #tpu.core_type<tc>, window_params = [{transform_indices = @transform_0, window_bounds = array<i64: 64, 64>}, {pipeline_mode = #tpu.pipeline_mode<synchronous>, transform_indices = @transform_1, window_bounds = array<i64: 64, 64>}, {pipeline_mode = #tpu.pipeline_mode<synchronous>, transform_indices = @transform_2, window_bounds = array<i64: 64, 128>}, {pipeline_mode = #tpu.pipeline_mode<synchronous>, transform_indices = @transform_3, window_bounds = array<i64: 1, 128>}, {transform_indices = @transform_4, window_bounds = array<i64: 64, 128>}]} {
    %c0 = arith.constant 0 : index
    %c0_0 = arith.constant 0 : index
    %0 = vector.load %arg1[%c0, %c0_0] : memref<64x64xf32, #tpu.memory_space<vmem>>, vector<64x64xf32>
    %c0_1 = arith.constant 0 : index
    %c0_2 = arith.constant 0 : index
    %1 = vector.load %arg2[%c0_1, %c0_2] : memref<64x64xf32, #tpu.memory_space<vmem>>, vector<64x64xf32>
    %cst = arith.constant dense<0.000000e+00> : vector<64x64xf32>
    %2 = tpu.matmul %0, %1, %cst {dimension_numbers = #tpu.dot_dimension_numbers<[1], [0], [0], [1], [0, 0, 1, 1], [], []>} : vector<64x64xf32>, vector<64x64xf32>, vector<64x64xf32> -> vector<64x64xf32>
    %3 = arith.subf %0, %2 : vector<64x64xf32>
    %4 = arith.mulf %3, %3 : vector<64x64xf32>
    %cst_3 = arith.constant dense<0.000000e+00> : vector<64x64xf32>
    %5 = tpu.matmul %4, %1, %cst_3 {dimension_numbers = #tpu.dot_dimension_numbers<[1], [0], [0], [1], [0, 0, 1, 1], [], []>} : vector<64x64xf32>, vector<64x64xf32>, vector<64x64xf32> -> vector<64x64xf32>
    %cst_4 = arith.constant 9.99999974E-6 : f32
    %6 = vector.broadcast %cst_4 : f32 to vector<64x64xf32>
    %7 = arith.addf %5, %6 : vector<64x64xf32>
    %8 = math.rsqrt %7 : vector<64x64xf32>
    %9 = arith.mulf %3, %8 : vector<64x64xf32>
    %c0_5 = arith.constant 0 : index
    %c0_6 = arith.constant 0 : index
    %10 = vector.load %arg3[%c0_5, %c0_6] : memref<64x128xf32, #tpu.memory_space<vmem>>, vector<64x128xf32>
    %cst_7 = arith.constant dense<0.000000e+00> : vector<64x128xf32>
    %11 = tpu.matmul %9, %10, %cst_7 {dimension_numbers = #tpu.dot_dimension_numbers<[1], [0], [0], [1], [0, 0, 1, 1], [], []>} : vector<64x64xf32>, vector<64x128xf32>, vector<64x128xf32> -> vector<64x128xf32>
    %c0_8 = arith.constant 0 : index
    %c0_9 = arith.constant 0 : index
    %12 = vector.load %arg4[%c0_8, %c0_9] : memref<1x128xf32, #tpu.memory_space<vmem>>, vector<1x128xf32>
    %13 = vector.broadcast %12 : vector<1x128xf32> to vector<64x128xf32>
    %14 = arith.addf %11, %13 : vector<64x128xf32>
    %c0_10 = arith.constant 0 : index
    %c0_11 = arith.constant 0 : index
    %15 = vector.load %arg5[%c0_10, %c0_11] : memref<64x128xf32, #tpu.memory_space<vmem>>, vector<64x128xf32>
    tpu.vector_store %arg5[%c0_10, %c0_11], %14 {strides = array<i32>} : memref<64x128xf32, #tpu.memory_space<vmem>>, vector<64x128xf32>,
    return
  }
  func.func @transform_0(%arg0: i32) -> (i32, i32) {
    %c0_i32 = arith.constant 0 : i32
    %c0_i32_0 = arith.constant 0 : i32
    return %arg0, %c0_i32 : i32, i32
  }
  func.func @transform_1(%arg0: i32) -> (i32, i32) {
    %c0_i32 = arith.constant 0 : i32
    %c0_i32_0 = arith.constant 0 : i32
    %c0_i32_1 = arith.constant 0 : i32
    return %c0_i32, %c0_i32_0 : i32, i32
  }
  func.func @transform_2(%arg0: i32) -> (i32, i32) {
    %c0_i32 = arith.constant 0 : i32
    %c0_i32_0 = arith.constant 0 : i32
    %c0_i32_1 = arith.constant 0 : i32
    return %c0_i32, %c0_i32_0 : i32, i32
  }
  func.func @transform_3(%arg0: i32) -> (i32, i32) {
    %c0_i32 = arith.constant 0 : i32
    %c0_i32_0 = arith.constant 0 : i32
    %c0_i32_1 = arith.constant 0 : i32
    return %c0_i32, %c0_i32_0 : i32, i32
  }
  func.func @transform_4(%arg0: i32) -> (i32, i32) {
    %c0_i32 = arith.constant 0 : i32
    %c0_i32_0 = arith.constant 0 : i32
    return %arg0, %c0_i32 : i32, i32
  }
}

</mosaic_0001>

<llo_original>
// kernel: tile.8
$region0: #{tile.8}
  #allocation0 [shape = 's32[1]{0}', space=sflag, size = 0x4, scoped, tag = 'scoped memory for tile.8']
  %s0 = inlined_call_operand.vmem [shape: f32[32], index: 0, kind: input, shape index: {}]
  %s1 = inlined_call_operand.vmem [shape: f32[4,32], index: 1, kind: output, shape index: {}]
  // Predicated region
  $region2: #{tile.8} parent=0 // pred_check
    _
  $region3: #{tile.8} parent=0 // pred_check_branch
    %3 = sbr.rel (0) target = $region5
  $region4: #{tile.8} parent=0 // pred_region
    _
  $region5: #{tile.8} parent=0 // pred_fallthru
    _
  %v4 = vld [vmem:[%s0] ss:$0 sm:$0xff]
  %5 = vst [vmem:[%s1] sm:$0xf] %v4

// kernel: tile.9
$region0: #{tile.9}
  %s0 = inlined_call_operand.vmem [shape: f32[4,32], index: 0, kind: input, shape index: {}]
  %s1 = inlined_call_operand.vmem [shape: f32[1,128], index: 1, kind: output, shape index: {}]
  $region1: #{tile.9} parent=0
    #allocation0 [shape = 'u8[4096]{0}', space=vmem, size = 0x1000, scoped, tag = 'scoped mem for output reshape']
    #allocation1 [shape = 'u8[4096]{0}', space=vmem, size = 0x1000, scoped, tag = 'scoped mem for input reshape']
    %s3 = sshllo.u32 0, 4
    %v4 = vld [vmem:[%s0] sm:%s3]
    %5 = vst [vmem:[#allocation1] sm:%s3] %v4
    %v6 = vld [vmem:[#allocation1] sm:$0x1]
    %vm7 = vcmask 261120
    %8 = vst.msk [vmem:[#allocation0] sm:$0x1] %vm7, %v6
    %s9 = scalar_lea.vmem [#allocation1], 3
    %v10 = vld [vmem:[%s9] sm:$0x1]
    %11 = vrot.lane.b32.xlu0 %v10, 96
    %v12 = vpop.permute.xlu0 %11
    %vm13 = vcmask 1048320
    %14 = vst.msk [vmem:[#allocation0] sm:$0x1] %vm13, %v12
    %s15 = scalar_lea.vmem [#allocation1], 2
    %v16 = vld [vmem:[%s15] sm:$0x1]
    %17 = vrot.lane.b32.xlu0 %v16, 64
    %v18 = vpop.permute.xlu0 %17
    %vm19 = vcmask 785920
    %20 = vst.msk [vmem:[#allocation0] sm:$0x1] %vm19, %v18
    %s21 = scalar_lea.vmem [#allocation1], 1
    %v22 = vld [vmem:[%s21] sm:$0x1]
    %23 = vrot.lane.b32.xlu0 %v22, 32
    %v24 = vpop.permute.xlu0 %23
    %vm25 = vcmask 523520
    %26 = vst.msk [vmem:[#allocation0] sm:$0x1] %vm25, %v24
    %s28 = sshllo.u32 0, 1
    %v30 = vld [vmem:[#allocation0] sm:%s28]
    %s31 = sshllo.u32 0, 1
    %32 = vst [vmem:[%s1] sm:%s31] %v30

// kernel: patch_splitting.1
$region0: #{patch_splitting.1}
  #allocation0 [shape = 'u32[]', space=smem, size = 0x4, offset = 0x4, fixed_abs, tag = 'smem constant byte address 0x4 - core index']
  #allocation1 [shape = 'u32[144,128]{1,0:T(1,128)}', space=vmem, size = 0x12000, scoped, tag = 'internal scratch']
  %s0 = inlined_call_operand.vmem [shape: f32[128,64], index: 0, kind: input, shape index: {}]
  %s1 = inlined_call_operand.vmem [shape: f32[64,64], index: 1, kind: input, shape index: {}]
  %s2 = inlined_call_operand.vmem [shape: f32[64,128], index: 2, kind: input, shape index: {}]
  %s3 = inlined_call_operand.vmem [shape: f32[1,128], index: 3, kind: input, shape index: {}]
  %s4 = inlined_call_operand.vmem [shape: f32[128,128], index: 4, kind: output, shape index: {}]
  %s5 = sld [smem:[#allocation0]]
  $region49: #{patch_splitting.1} parent=0
    _
  %s7 = ssub.s32 1, %s5
  %s8 = scalar_select 0, %s7, %s5
  loop: start=0, step=1, limit=4
  $region2: #{patch_splitting.1} parent=0 // loop_pre_header
    _
  $region3: #{patch_splitting.1} parent=0 // loop_header
    %s10 = sphi 0, %s14
    %p11 = scmp.ge.s32.totalorder %s10, 4
    %s20 = sphi 0, %s22
    %s23 = sphi 0, %s20
    %s24 = sphi 0, %s23
    %s40 = sphi 0, %s24
    %s44 = sphi 0, %s44
    %s46 = sphi 0, %s44
    %s47 = sphi 0, %s46
    %s61 = sphi 0, %s47
    %s65 = sphi 0, %s65
    %s67 = sphi 0, %s65
    %s68 = sphi 0, %s67
    %s82 = sphi 0, %s68
    %s86 = sphi 0, %s86
    %s88 = sphi 0, %s86
    %s89 = sphi 0, %s88
    %s103 = sphi 0, %s89
    %s109 = sphi 0, %s111
    %s112 = sphi 0, %s109
    %s113 = sphi 0, %s112
    %s129 = sphi 0, %s113
  $region4: #{patch_splitting.1} parent=0 // loop_header_branch
    %13 = sbr.rel (%p11) target = $region8
  $region5: #{patch_splitting.1} parent=0 // loop_body
    %s15 = ssub.s32 %s10, 1
    %s16 = ssub.s32 %s10, 2
    %s17 = sadd.s32 %s10, 1
    %s18 = ssub.s32 %s10, %s17
    %p19 = scmp.eq.s32.totalorder %s18, 0
    %s21 = sadd.s32 %s20, 1
    %s22 = scalar_select %p19, %s20, %s21
    %p25 = pneg %p19
    %p26 = scmp.eq.s32.totalorder %s10, 1
    %p27 = por %p25, %p26
    %p28 = scmp.ne.s32.totalorder %s20, %s23
    %p29 = scmp.eq.s32.totalorder %s10, 0
    %p30 = por %p28, %p29
    %p31 = scmp.ne.s32.totalorder %s20, %s23
    %p32 = scmp.eq.s32.totalorder %s15, 1
    %p33 = por %p31, %p32
    %p34 = scmp.ne.s32.totalorder %s23, %s24
    %p35 = scmp.eq.s32.totalorder %s15, 0
    %p36 = por %p34, %p35
    %p37 = scmp.ne.s32.totalorder %s23, %s24
    %p38 = scmp.eq.s32.totalorder %s16, 1
    %p39 = por %p37, %p38
    %p41 = scmp.ne.s32.totalorder %s24, %s40
    %p42 = scmp.eq.s32.totalorder %s16, 0
    %p43 = por %p41, %p42
    %s45 = sadd.s32 %s44, 1
    %p48 = scmp.eq.s32.totalorder %s10, 1
    %p49 = scmp.ne.s32.totalorder %s44, %s46
    %p50 = scmp.eq.s32.totalorder %s10, 0
    %p51 = por %p49, %p50
    %p52 = scmp.ne.s32.totalorder %s44, %s46
    %p53 = scmp.eq.s32.totalorder %s15, 1
    %p54 = por %p52, %p53
    %p55 = scmp.ne.s32.totalorder %s46, %s47
    %p56 = scmp.eq.s32.totalorder %s15, 0
    %p57 = por %p55, %p56
    %p58 = scmp.ne.s32.totalorder %s46, %s47
    %p59 = scmp.eq.s32.totalorder %s16, 1
    %p60 = por %p58, %p59
    %p62 = scmp.ne.s32.totalorder %s47, %s61
    %p63 = scmp.eq.s32.totalorder %s16, 0
    %p64 = por %p62, %p63
    %s66 = sadd.s32 %s65, 1
    %p69 = scmp.eq.s32.totalorder %s10, 1
    %p70 = scmp.ne.s32.totalorder %s65, %s67
    %p71 = scmp.eq.s32.totalorder %s10, 0
    %p72 = por %p70, %p71
    %p73 = scmp.ne.s32.totalorder %s65, %s67
    %p74 = scmp.eq.s32.totalorder %s15, 1
    %p75 = por %p73, %p74
    %p76 = scmp.ne.s32.totalorder %s67, %s68
    %p77 = scmp.eq.s32.totalorder %s15, 0
    %p78 = por %p76, %p77
    %p79 = scmp.ne.s32.totalorder %s67, %s68
    %p80 = scmp.eq.s32.totalorder %s16, 1
    %p81 = por %p79, %p80
    %p83 = scmp.ne.s32.totalorder %s68, %s82
    %p84 = scmp.eq.s32.totalorder %s16, 0
    %p85 = por %p83, %p84
    %s87 = sadd.s32 %s86, 1
    %p90 = scmp.eq.s32.totalorder %s10, 1
    %p91 = scmp.ne.s32.totalorder %s86, %s88
    %p92 = scmp.eq.s32.totalorder %s10, 0
    %p93 = por %p91, %p92
    %p94 = scmp.ne.s32.totalorder %s86, %s88
    %p95 = scmp.eq.s32.totalorder %s15, 1
    %p96 = por %p94, %p95
    %p97 = scmp.ne.s32.totalorder %s88, %s89
    %p98 = scmp.eq.s32.totalorder %s15, 0
    %p99 = por %p97, %p98
    %p100 = scmp.ne.s32.totalorder %s88, %s89
    %p101 = scmp.eq.s32.totalorder %s16, 1
    %p102 = por %p100, %p101
    %p104 = scmp.ne.s32.totalorder %s89, %s103
    %p105 = scmp.eq.s32.totalorder %s16, 0
    %p106 = por %p104, %p105
    %s107 = ssub.s32 %s10, %s17
    %p108 = scmp.eq.s32.totalorder %s107, 0
    %s110 = sadd.s32 %s109, 1
    %s111 = scalar_select %p108, %s109, %s110
    %p114 = pneg %p108
    %p115 = scmp.eq.s32.totalorder %s10, 1
    %p116 = por %p114, %p115
    %p117 = scmp.ne.s32.totalorder %s109, %s112
    %p118 = scmp.eq.s32.totalorder %s10, 0
    %p119 = por %p117, %p118
    %p120 = scmp.ne.s32.totalorder %s109, %s112
    %p121 = scmp.eq.s32.totalorder %s15, 1
    %p122 = por %p120, %p121
    %p123 = scmp.ne.s32.totalorder %s112, %s113
    %p124 = scmp.eq.s32.totalorder %s15, 0
    %p125 = por %p123, %p124
    %p126 = scmp.ne.s32.totalorder %s112, %s113
    %p127 = scmp.eq.s32.totalorder %s16, 1
    %p128 = por %p126, %p127
    %p130 = scmp.ne.s32.totalorder %s113, %s129
    %p131 = scmp.eq.s32.totalorder %s16, 0
    %p132 = por %p130, %p131
    %p133 = scmp.le.s32.totalorder 1, %s10
    %p134 = scmp.lt.s32.totalorder %s10, 3
    %p135 = pnand %p133, %p134
    %p136 = pneg %p135
    // Predicated region
    $region9: #{patch_splitting.1} parent=5 // pred_check
      _
    $region10: #{patch_splitting.1} parent=5 // pred_check_branch
      %138 = sbr.rel (%p135) target = $region12
    $region11: #{patch_splitting.1} parent=5 // pred_region
      %s139 = ssub.s32 %s10, 1
      // Predicated region
      $region13: #{patch_splitting.1} parent=11 // pred_check
        %p140 = pneg %p57
      $region14: #{patch_splitting.1} parent=11 // pred_check_branch
        %142 = sbr.rel (%p140) target = $region16
      $region15: #{patch_splitting.1} parent=11 // pred_region
        _
      $region16: #{patch_splitting.1} parent=11 // pred_fallthru
        _
      // Predicated region
      $region17: #{patch_splitting.1} parent=11 // pred_check
        %p143 = pneg %p78
      $region18: #{patch_splitting.1} parent=11 // pred_check_branch
        %145 = sbr.rel (%p143) target = $region20
      $region19: #{patch_splitting.1} parent=11 // pred_region
        _
      $region20: #{patch_splitting.1} parent=11 // pred_fallthru
        _
      // Predicated region
      $region21: #{patch_splitting.1} parent=11 // pred_check
        %p146 = pneg %p99
      $region22: #{patch_splitting.1} parent=11 // pred_check_branch
        %148 = sbr.rel (%p146) target = $region24
      $region23: #{patch_splitting.1} parent=11 // pred_region
        _
      $region24: #{patch_splitting.1} parent=11 // pred_fallthru
        _
    $region12: #{patch_splitting.1} parent=5 // pred_fallthru
      _
    %p149 = scmp.lt.s32.totalorder %s10, 2
    // Predicated region
    $region25: #{patch_splitting.1} parent=5 // pred_check
      %p150 = pneg %p149
    $region26: #{patch_splitting.1} parent=5 // pred_check_branch
      %152 = sbr.rel (%p150) target = $region28
    $region27: #{patch_splitting.1} parent=5 // pred_region
      // Predicated region
      $region29: #{patch_splitting.1} parent=27 // pred_check
        %p153 = pneg %p30
      $region30: #{patch_splitting.1} parent=27 // pred_check_branch
        %155 = sbr.rel (%p153) target = $region32
      $region31: #{patch_splitting.1} parent=27 // pred_region
        %s156 = smul.u32 8, %s10
        %p157 = scmp.lt.s32.totalorder %s156, 15
        %s158 = scalar_select %p157, %s156, 15
        %s159 = smul.addr %s158, 8
        %s160 = scalar_lea.vmem %s0, %s159
        %s161 = smul.u32 8, %s10
      $region32: #{patch_splitting.1} parent=27 // pred_fallthru
        _
    $region28: #{patch_splitting.1} parent=5 // pred_fallthru
      _
    %p162 = scmp.le.s32.totalorder 1, %s10
    %p163 = scmp.lt.s32.totalorder %s10, 3
    %p164 = pnand %p162, %p163
    %p165 = pneg %p164
    // Predicated region
    $region33: #{patch_splitting.1} parent=5 // pred_check
      _
    $region34: #{patch_splitting.1} parent=5 // pred_check_branch
      %167 = sbr.rel (%p164) target = $region36
    $region35: #{patch_splitting.1} parent=5 // pred_region
      %s168 = ssub.s32 %s10, 1
      %s169 = smul.u32 8, %s15
      %p170 = scmp.lt.s32.totalorder %s169, 15
      %s171 = scalar_select %p170, %s169, 15
      %s172 = smul.addr %s171, 8
      %s173 = scalar_lea.vmem %s0, %s172
      %p174 = pneg %p36
      %p175 = pneg %p33
      %p176 = pneg %p57
      %p177 = pneg %p54
      %p178 = pneg %p78
      %p179 = pneg %p75
      %p180 = pneg %p99
      %p181 = pneg %p96
      %p182 = pneg %p125
      %p183 = pneg %p122
      %s184 = smul.u32 8, %s15
      %p185 = scmp.lt.s32.totalorder %s184, 15
      %s186 = scalar_select %p185, %s184, 15
      %s187 = smul.addr %s186, 8
      %s188 = scalar_lea.vmem %s4, %s187
      %s189 = smul.u32 8, %s15
      %p190 = scmp.lt.s32.totalorder %s189, 15
      %s191 = scalar_select %p190, %s189, 15
      %s192 = smul.addr %s191, 8
      %s193 = scalar_lea.vmem %s0, %s192
      %s194 = smul.u32 8, %s15
      %s195 = smul.u32 8, %s15
      %p196 = scmp.lt.s32.totalorder %s195, 15
      %s197 = scalar_select %p196, %s195, 15
      %s198 = smul.addr %s197, 8
      %s199 = scalar_lea.vmem %s4, %s198
      %s200 = smul.u32 8, %s15
      %v201 = vld [vmem:[%s193] sm:$0xff]
      %v202 = vld [vmem:[%s193 + $0x8] sm:$0xff]
      %v203 = vld [vmem:[%s193 + $0x10] sm:$0xff]
      %v204 = vld [vmem:[%s193 + $0x18] sm:$0xff]
      %v205 = vld [vmem:[%s193 + $0x20] sm:$0xff]
      %v206 = vld [vmem:[%s193 + $0x28] sm:$0xff]
      %v207 = vld [vmem:[%s193 + $0x30] sm:$0xff]
      %v208 = vld [vmem:[%s193 + $0x38] sm:$0xff]
      %v209 = vld [vmem:[%s1] sm:$0xff]
      %v210 = vld [vmem:[%s1 + $0x8] sm:$0xff]
      %v211 = vld [vmem:[%s1 + $0x10] sm:$0xff]
      %v212 = vld [vmem:[%s1 + $0x18] sm:$0xff]
      %v213 = vld [vmem:[%s1 + $0x20] sm:$0xff]
      %v214 = vld [vmem:[%s1 + $0x28] sm:$0xff]
      %v215 = vld [vmem:[%s1 + $0x30] sm:$0xff]
      %v216 = vld [vmem:[%s1 + $0x38] sm:$0xff]
      %vm217 = vcmask 523264
      %v219 = vsel %vm217, %v201, 0
      %v222 = vsel %vm217, %v202, 0
      %v225 = vsel %vm217, %v203, 0
      %v228 = vsel %vm217, %v204, 0
      %v231 = vsel %vm217, %v205, 0
      %v234 = vsel %vm217, %v206, 0
      %v237 = vsel %vm217, %v207, 0
      %v240 = vsel %vm217, %v208, 0
      %242 = vmatprep.subr.mxu0 0.0
      %243 = vmatpush1.msra.mxu0 %v209
      %244 = vmatprep.subr.mxu0 0.0
      %245 = vmatpush1.msra.mxu0 %v210
      %246 = vmatprep.subr.mxu0 0.0
      %247 = vmatpush1.msra.mxu0 %v211
      %248 = vmatprep.subr.mxu0 0.0
      %249 = vmatpush1.msra.mxu0 %v212
      %250 = vmatprep.subr.mxu0 0.0
      %251 = vmatpush1.msra.mxu0 %v213
      %252 = vmatprep.subr.mxu0 0.0
      %253 = vmatpush1.msra.mxu0 %v214
      %254 = vmatprep.subr.mxu0 0.0
      %255 = vmatpush1.msra.mxu0 %v215
      %256 = vmatprep.subr.mxu0 0.0
      %257 = vmatpush1.msra.mxu0 %v216
      %258 = vmatprep.subr.mxu0 0.0
      %259 = vmatpush1.msra.mxu0 0.0
      %260 = vmatprep.subr.mxu0 0.0
      %261 = vmatpush1.msra.mxu0 0.0
      %262 = vmatprep.subr.mxu0 0.0
      %263 = vmatpush1.msra.mxu0 0.0
      %264 = vmatprep.subr.mxu0 0.0
      %265 = vmatpush1.msra.mxu0 0.0
      %266 = vmatprep.subr.mxu0 0.0
      %267 = vmatpush1.msra.mxu0 0.0
      %268 = vmatprep.subr.mxu0 0.0
      %269 = vmatpush1.msra.mxu0 0.0
      %270 = vmatprep.subr.mxu0 0.0
      %271 = vmatpush1.msra.mxu0 0.0
      %272 = vmatprep.subr.mxu0 0.0
      %273 = vmatpush1.msra.mxu0 0.0
      %274 = vmatprep.subr.mxu0 0.0
      %275 = vmatpush1.msra.mxu0 0.0
      %276 = vmatprep.subr.mxu0 0.0
      %277 = vmatpush1.msra.mxu0 0.0
      %278 = vmatprep.subr.mxu0 0.0
      %279 = vmatpush1.msra.mxu0 0.0
      %280 = vmatprep.subr.mxu0 0.0
      %281 = vmatpush1.msra.mxu0 0.0
      %282 = vmatprep.subr.mxu0 0.0
      %283 = vmatpush1.msra.mxu0 0.0
      %284 = vmatprep.subr.mxu0 0.0
      %285 = vmatpush1.msra.mxu0 0.0
      %286 = vmatprep.subr.mxu0 0.0
      %287 = vmatpush1.msra.mxu0 0.0
      %288 = vmatprep.subr.mxu0 0.0
      %289 = vmatpush1.msra.mxu0 0.0
      %290 = vmatprep.subr.mxu0 0.0
      %291 = vmatpush1.msra.mxu0 0.0
      %292 = vmatprep.subr.mxu0 0.0
      %293 = vmatpush1.msra.mxu0 0.0
      %294 = vmatprep.subr.mxu0 0.0
      %295 = vmatpush1.msra.mxu0 0.0
      %296 = vmatprep.subr.mxu0 0.0
      %297 = vmatpush1.msra.mxu0 0.0
      %298 = vmatprep.subr.mxu0 0.0
      %299 = vmatpush1.msra.mxu0 0.0
      %300 = vmatprep.subr.mxu0 0.0
      %301 = vmatpush1.msra.mxu0 0.0
      %302 = vmatprep.subr.mxu0 0.0
      %303 = vmatpush1.msra.mxu0 0.0
      %304 = vmatprep.subr.mxu0 0.0
      %305 = vmatpush1.msra.mxu0 0.0
      %306 = vmatprep.mubr.f32.mxu0 0.0
      %307 = vmatmul.mubr.f32.gmra.mrb[0].mxu0 %v219
      %v308 = vpop.f32.mrb[0].mxu0
      %v309 = vadd.f32 0.0, %v308
      %v310 = vpop.f32.mrb[0].mxu0
      %311 = vmatprep.mubr.f32.mxu0 0.0
      %312 = vmatmul.mubr.f32.gmra.mrb[0].mxu0 %v222
      %v313 = vpop.f32.mrb[0].mxu0
      %v314 = vadd.f32 0.0, %v313
      %v315 = vpop.f32.mrb[0].mxu0
      %316 = vmatprep.mubr.f32.mxu0 0.0
      %317 = vmatmul.mubr.f32.gmra.mrb[0].mxu0 %v225
      %v318 = vpop.f32.mrb[0].mxu0
      %v319 = vadd.f32 0.0, %v318
      %v320 = vpop.f32.mrb[0].mxu0
      %321 = vmatprep.mubr.f32.mxu0 0.0
      %322 = vmatmul.mubr.f32.gmra.mrb[0].mxu0 %v228
      %v323 = vpop.f32.mrb[0].mxu0
      %v324 = vadd.f32 0.0, %v323
      %v325 = vpop.f32.mrb[0].mxu0
      %326 = vmatprep.mubr.f32.mxu0 0.0
      %327 = vmatmul.mubr.f32.gmra.mrb[0].mxu0 %v231
      %v328 = vpop.f32.mrb[0].mxu0
      %v329 = vadd.f32 0.0, %v328
      %v330 = vpop.f32.mrb[0].mxu0
      %331 = vmatprep.mubr.f32.mxu0 0.0
      %332 = vmatmul.mubr.f32.gmra.mrb[0].mxu0 %v234
      %v333 = vpop.f32.mrb[0].mxu0
      %v334 = vadd.f32 0.0, %v333
      %v335 = vpop.f32.mrb[0].mxu0
      %336 = vmatprep.mubr.f32.mxu0 0.0
      %337 = vmatmul.mubr.f32.gmra.mrb[0].mxu0 %v237
      %v338 = vpop.f32.mrb[0].mxu0
      %v339 = vadd.f32 0.0, %v338
      %v340 = vpop.f32.mrb[0].mxu0
      %341 = vmatprep.mubr.f32.mxu0 0.0
      %342 = vmatmul.mubr.f32.gmra.mrb[0].mxu0 %v240
      %v343 = vpop.f32.mrb[0].mxu0
      %v344 = vadd.f32 0.0, %v343
      %v345 = vpop.f32.mrb[0].mxu0
      %346 = vdwg.mxu0
      %v347 = vsub.f32 %v201, %v309
      %v348 = vsub.f32 %v202, %v314
      %v349 = vsub.f32 %v203, %v319
      %v350 = vsub.f32 %v204, %v324
      %v351 = vsub.f32 %v205, %v329
      %v352 = vsub.f32 %v206, %v334
      %v353 = vsub.f32 %v207, %v339
      %v354 = vsub.f32 %v208, %v344
      %v355 = vmul.f32 %v347, %v347
      %v356 = vmul.f32 %v348, %v348
      %v357 = vmul.f32 %v349, %v349
      %v358 = vmul.f32 %v350, %v350
      %v359 = vmul.f32 %v351, %v351
      %v360 = vmul.f32 %v352, %v352
      %v361 = vmul.f32 %v353, %v353
      %v362 = vmul.f32 %v354, %v354
      %v364 = vsel %vm217, %v355, 0
      %v367 = vsel %vm217, %v356, 0
      %v370 = vsel %vm217, %v357, 0
      %v373 = vsel %vm217, %v358, 0
      %v376 = vsel %vm217, %v359, 0
      %v379 = vsel %vm217, %v360, 0
      %v382 = vsel %vm217, %v361, 0
      %v385 = vsel %vm217, %v362, 0
      %387 = vmatprep.subr.mxu0 0.0
      %388 = vmatpush1.msra.mxu0 %v209
      %389 = vmatprep.subr.mxu0 0.0
      %390 = vmatpush1.msra.mxu0 %v210
      %391 = vmatprep.subr.mxu0 0.0
      %392 = vmatpush1.msra.mxu0 %v211
      %393 = vmatprep.subr.mxu0 0.0
      %394 = vmatpush1.msra.mxu0 %v212
      %395 = vmatprep.subr.mxu0 0.0
      %396 = vmatpush1.msra.mxu0 %v213
      %397 = vmatprep.subr.mxu0 0.0
      %398 = vmatpush1.msra.mxu0 %v214
      %399 = vmatprep.subr.mxu0 0.0
      %400 = vmatpush1.msra.mxu0 %v215
      %401 = vmatprep.subr.mxu0 0.0
      %402 = vmatpush1.msra.mxu0 %v216
      %403 = vmatprep.subr.mxu0 0.0
      %404 = vmatpush1.msra.mxu0 0.0
      %405 = vmatprep.subr.mxu0 0.0
      %406 = vmatpush1.msra.mxu0 0.0
      %407 = vmatprep.subr.mxu0 0.0
      %408 = vmatpush1.msra.mxu0 0.0
      %409 = vmatprep.subr.mxu0 0.0
      %410 = vmatpush1.msra.mxu0 0.0
      %411 = vmatprep.subr.mxu0 0.0
      %412 = vmatpush1.msra.mxu0 0.0
      %413 = vmatprep.subr.mxu0 0.0
      %414 = vmatpush1.msra.mxu0 0.0
      %415 = vmatprep.subr.mxu0 0.0
      %416 = vmatpush1.msra.mxu0 0.0
      %417 = vmatprep.subr.mxu0 0.0
      %418 = vmatpush1.msra.mxu0 0.0
      %419 = vmatprep.subr.mxu0 0.0
      %420 = vmatpush1.msra.mxu0 0.0
      %421 = vmatprep.subr.mxu0 0.0
      %422 = vmatpush1.msra.mxu0 0.0
      %423 = vmatprep.subr.mxu0 0.0
      %424 = vmatpush1.msra.mxu0 0.0
      %425 = vmatprep.subr.mxu0 0.0
      %426 = vmatpush1.msra.mxu0 0.0
      %427 = vmatprep.subr.mxu0 0.0
      %428 = vmatpush1.msra.mxu0 0.0
      %429 = vmatprep.subr.mxu0 0.0
      %430 = vmatpush1.msra.mxu0 0.0
      %431 = vmatprep.subr.mxu0 0.0
      %432 = vmatpush1.msra.mxu0 0.0
      %433 = vmatprep.subr.mxu0 0.0
      %434 = vmatpush1.msra.mxu0 0.0
      %435 = vmatprep.subr.mxu0 0.0
      %436 = vmatpush1.msra.mxu0 0.0
      %437 = vmatprep.subr.mxu0 0.0
      %438 = vmatpush1.msra.mxu0 0.0
      %439 = vmatprep.subr.mxu0 0.0
      %440 = vmatpush1.msra.mxu0 0.0
      %441 = vmatprep.subr.mxu0 0.0
      %442 = vmatpush1.msra.mxu0 0.0
      %443 = vmatprep.subr.mxu0 0.0
      %444 = vmatpush1.msra.mxu0 0.0
      %445 = vmatprep.subr.mxu0 0.0
      %446 = vmatpush1.msra.mxu0 0.0
      %447 = vmatprep.subr.mxu0 0.0
      %448 = vmatpush1.msra.mxu0 0.0
      %449 = vmatprep.subr.mxu0 0.0
      %450 = vmatpush1.msra.mxu0 0.0
      %451 = vmatprep.mubr.f32.mxu0 0.0
      %452 = vmatmul.mubr.f32.gmra.mrb[0].mxu0 %v364
      %v453 = vpop.f32.mrb[0].mxu0
      %v454 = vadd.f32 1e-05, %v453
      %v455 = vpop.f32.mrb[0].mxu0
      %456 = vmatprep.mubr.f32.mxu0 0.0
      %457 = vmatmul.mubr.f32.gmra.mrb[0].mxu0 %v367
      %v458 = vpop.f32.mrb[0].mxu0
      %v459 = vadd.f32 1e-05, %v458
      %v460 = vpop.f32.mrb[0].mxu0
      %461 = vmatprep.mubr.f32.mxu0 0.0
      %462 = vmatmul.mubr.f32.gmra.mrb[0].mxu0 %v370
      %v463 = vpop.f32.mrb[0].mxu0
      %v464 = vadd.f32 1e-05, %v463
      %v465 = vpop.f32.mrb[0].mxu0
      %466 = vmatprep.mubr.f32.mxu0 0.0
      %467 = vmatmul.mubr.f32.gmra.mrb[0].mxu0 %v373
      %v468 = vpop.f32.mrb[0].mxu0
      %v469 = vadd.f32 1e-05, %v468
      %v470 = vpop.f32.mrb[0].mxu0
      %471 = vmatprep.mubr.f32.mxu0 0.0
      %472 = vmatmul.mubr.f32.gmra.mrb[0].mxu0 %v376
      %v473 = vpop.f32.mrb[0].mxu0
      %v474 = vadd.f32 1e-05, %v473
      %v475 = vpop.f32.mrb[0].mxu0
      %476 = vmatprep.mubr.f32.mxu0 0.0
      %477 = vmatmul.mubr.f32.gmra.mrb[0].mxu0 %v379
      %v478 = vpop.f32.mrb[0].mxu0
      %v479 = vadd.f32 1e-05, %v478
      %v480 = vpop.f32.mrb[0].mxu0
      %481 = vmatprep.mubr.f32.mxu0 0.0
      %482 = vmatmul.mubr.f32.gmra.mrb[0].mxu0 %v382
      %v483 = vpop.f32.mrb[0].mxu0
      %v484 = vadd.f32 1e-05, %v483
      %v485 = vpop.f32.mrb[0].mxu0
      %486 = vmatprep.mubr.f32.mxu0 0.0
      %487 = vmatmul.mubr.f32.gmra.mrb[0].mxu0 %v385
      %v488 = vpop.f32.mrb[0].mxu0
      %v489 = vadd.f32 1e-05, %v488
      %v490 = vpop.f32.mrb[0].mxu0
      %491 = vdwg.mxu0
      %v492 = vrsqrt.pop %v454
      %v493 = vrsqrt.pop %v459
      %v494 = vrsqrt.pop %v464
      %v495 = vrsqrt.pop %v469
      %v496 = vrsqrt.pop %v474
      %v497 = vrsqrt.pop %v479
      %v498 = vrsqrt.pop %v484
      %v499 = vrsqrt.pop %v489
      %v500 = vmul.f32 %v347, %v492
      %v501 = vmul.f32 %v348, %v493
      %v502 = vmul.f32 %v349, %v494
      %v503 = vmul.f32 %v350, %v495
      %v504 = vmul.f32 %v351, %v496
      %v505 = vmul.f32 %v352, %v497
      %v506 = vmul.f32 %v353, %v498
      %v507 = vmul.f32 %v354, %v499
      %v508 = vld [vmem:[%s2] sm:$0xff]
      %v509 = vld [vmem:[%s2 + $0x8] sm:$0xff]
      %v510 = vld [vmem:[%s2 + $0x10] sm:$0xff]
      %v511 = vld [vmem:[%s2 + $0x18] sm:$0xff]
      %v512 = vld [vmem:[%s2 + $0x20] sm:$0xff]
      %v513 = vld [vmem:[%s2 + $0x28] sm:$0xff]
      %v514 = vld [vmem:[%s2 + $0x30] sm:$0xff]
      %v515 = vld [vmem:[%s2 + $0x38] sm:$0xff]
      %v516 = vld [vmem:[%s3] sm:$0x1]
      %v518 = vlaneseq
      %v519 = vshrl.u32 %v518, 7
      %v520 = vsub.s32 0, %v519
      %v521 = vrot.slane %v516, %v520
      %v524 = vsel %vm217, %v500, 0
      %v527 = vsel %vm217, %v501, 0
      %v530 = vsel %vm217, %v502, 0
      %v533 = vsel %vm217, %v503, 0
      %v536 = vsel %vm217, %v504, 0
      %v539 = vsel %vm217, %v505, 0
      %v542 = vsel %vm217, %v506, 0
      %v545 = vsel %vm217, %v507, 0
      %547 = vmatprep.subr.mxu0 0.0
      %548 = vmatpush1.msra.mxu0 %v508
      %549 = vmatprep.subr.mxu0 0.0
      %550 = vmatpush1.msra.mxu0 %v509
      %551 = vmatprep.subr.mxu0 0.0
      %552 = vmatpush1.msra.mxu0 %v510
      %553 = vmatprep.subr.mxu0 0.0
      %554 = vmatpush1.msra.mxu0 %v511
      %555 = vmatprep.subr.mxu0 0.0
      %556 = vmatpush1.msra.mxu0 %v512
      %557 = vmatprep.subr.mxu0 0.0
      %558 = vmatpush1.msra.mxu0 %v513
      %559 = vmatprep.subr.mxu0 0.0
      %560 = vmatpush1.msra.mxu0 %v514
      %561 = vmatprep.subr.mxu0 0.0
      %562 = vmatpush1.msra.mxu0 %v515
      %563 = vmatprep.subr.mxu0 0.0
      %564 = vmatpush1.msra.mxu0 0.0
      %565 = vmatprep.subr.mxu0 0.0
      %566 = vmatpush1.msra.mxu0 0.0
      %567 = vmatprep.subr.mxu0 0.0
      %568 = vmatpush1.msra.mxu0 0.0
      %569 = vmatprep.subr.mxu0 0.0
      %570 = vmatpush1.msra.mxu0 0.0
      %571 = vmatprep.subr.mxu0 0.0
      %572 = vmatpush1.msra.mxu0 0.0
      %573 = vmatprep.subr.mxu0 0.0
      %574 = vmatpush1.msra.mxu0 0.0
      %575 = vmatprep.subr.mxu0 0.0
      %576 = vmatpush1.msra.mxu0 0.0
      %577 = vmatprep.subr.mxu0 0.0
      %578 = vmatpush1.msra.mxu0 0.0
      %579 = vmatprep.subr.mxu0 0.0
      %580 = vmatpush1.msra.mxu0 0.0
      %581 = vmatprep.subr.mxu0 0.0
      %582 = vmatpush1.msra.mxu0 0.0
      %583 = vmatprep.subr.mxu0 0.0
      %584 = vmatpush1.msra.mxu0 0.0
      %585 = vmatprep.subr.mxu0 0.0
      %586 = vmatpush1.msra.mxu0 0.0
      %587 = vmatprep.subr.mxu0 0.0
      %588 = vmatpush1.msra.mxu0 0.0
      %589 = vmatprep.subr.mxu0 0.0
      %590 = vmatpush1.msra.mxu0 0.0
      %591 = vmatprep.subr.mxu0 0.0
      %592 = vmatpush1.msra.mxu0 0.0
      %593 = vmatprep.subr.mxu0 0.0
      %594 = vmatpush1.msra.mxu0 0.0
      %595 = vmatprep.subr.mxu0 0.0
      %596 = vmatpush1.msra.mxu0 0.0
      %597 = vmatprep.subr.mxu0 0.0
      %598 = vmatpush1.msra.mxu0 0.0
      %599 = vmatprep.subr.mxu0 0.0
      %600 = vmatpush1.msra.mxu0 0.0
      %601 = vmatprep.subr.mxu0 0.0
      %602 = vmatpush1.msra.mxu0 0.0
      %603 = vmatprep.subr.mxu0 0.0
      %604 = vmatpush1.msra.mxu0 0.0
      %605 = vmatprep.subr.mxu0 0.0
      %606 = vmatpush1.msra.mxu0 0.0
      %607 = vmatprep.subr.mxu0 0.0
      %608 = vmatpush1.msra.mxu0 0.0
      %609 = vmatprep.subr.mxu0 0.0
      %610 = vmatpush1.msra.mxu0 0.0
      %611 = vmatprep.mubr.f32.mxu0 0.0
      %612 = vmatmul.mubr.f32.gmra.mrb[0].mxu0 %v524
      %v613 = vpop.f32.mrb[0].mxu0
      %v614 = vadd.f32 %v521, %v613
      %v615 = vpop.f32.mrb[0].mxu0
      %616 = vmatprep.mubr.f32.mxu0 0.0
      %617 = vmatmul.mubr.f32.gmra.mrb[0].mxu0 %v527
      %v618 = vpop.f32.mrb[0].mxu0
      %v619 = vadd.f32 %v521, %v618
      %v620 = vpop.f32.mrb[0].mxu0
      %621 = vmatprep.mubr.f32.mxu0 0.0
      %622 = vmatmul.mubr.f32.gmra.mrb[0].mxu0 %v530
      %v623 = vpop.f32.mrb[0].mxu0
      %v624 = vadd.f32 %v521, %v623
      %v625 = vpop.f32.mrb[0].mxu0
      %626 = vmatprep.mubr.f32.mxu0 0.0
      %627 = vmatmul.mubr.f32.gmra.mrb[0].mxu0 %v533
      %v628 = vpop.f32.mrb[0].mxu0
      %v629 = vadd.f32 %v521, %v628
      %v630 = vpop.f32.mrb[0].mxu0
      %631 = vmatprep.mubr.f32.mxu0 0.0
      %632 = vmatmul.mubr.f32.gmra.mrb[0].mxu0 %v536
      %v633 = vpop.f32.mrb[0].mxu0
      %v634 = vadd.f32 %v521, %v633
      %v635 = vpop.f32.mrb[0].mxu0
      %636 = vmatprep.mubr.f32.mxu0 0.0
      %637 = vmatmul.mubr.f32.gmra.mrb[0].mxu0 %v539
      %v638 = vpop.f32.mrb[0].mxu0
      %v639 = vadd.f32 %v521, %v638
      %v640 = vpop.f32.mrb[0].mxu0
      %641 = vmatprep.mubr.f32.mxu0 0.0
      %642 = vmatmul.mubr.f32.gmra.mrb[0].mxu0 %v542
      %v643 = vpop.f32.mrb[0].mxu0
      %v644 = vadd.f32 %v521, %v643
      %v645 = vpop.f32.mrb[0].mxu0
      %646 = vmatprep.mubr.f32.mxu0 0.0
      %647 = vmatmul.mubr.f32.gmra.mrb[0].mxu0 %v545
      %v648 = vpop.f32.mrb[0].mxu0
      %v649 = vadd.f32 %v521, %v648
      %v650 = vpop.f32.mrb[0].mxu0
      %651 = vdwg.mxu0
      %652 = vst [vmem:[%s199] sm:$0xff] %v614
      %653 = vst [vmem:[%s199 + $0x8] sm:$0xff] %v619
      %654 = vst [vmem:[%s199 + $0x10] sm:$0xff] %v624
      %655 = vst [vmem:[%s199 + $0x18] sm:$0xff] %v629
      %656 = vst [vmem:[%s199 + $0x20] sm:$0xff] %v634
      %657 = vst [vmem:[%s199 + $0x28] sm:$0xff] %v639
      %658 = vst [vmem:[%s199 + $0x30] sm:$0xff] %v644
      %659 = vst [vmem:[%s199 + $0x38] sm:$0xff] %v649
      %s660 = smul.u32 8, %s15
      %p661 = scmp.lt.s32.totalorder %s660, 15
      %s662 = scalar_select %p661, %s660, 15
      %s663 = smul.addr %s662, 8
      %s664 = scalar_lea.vmem %s4, %s663
      // Predicated region
      $region37: #{patch_splitting.1} parent=35 // pred_check
        %p665 = pneg %p122
      $region38: #{patch_splitting.1} parent=35 // pred_check_branch
        %667 = sbr.rel (%p665) target = $region40
      $region39: #{patch_splitting.1} parent=35 // pred_region
        %s668 = smul.u32 8, %s15
      $region40: #{patch_splitting.1} parent=35 // pred_fallthru
        _
    $region36: #{patch_splitting.1} parent=5 // pred_fallthru
      _
    %p669 = scmp.le.s32.totalorder 2, %s10
    // Predicated region
    $region41: #{patch_splitting.1} parent=5 // pred_check
      %p670 = pneg %p669
    $region42: #{patch_splitting.1} parent=5 // pred_check_branch
      %672 = sbr.rel (%p670) target = $region44
    $region43: #{patch_splitting.1} parent=5 // pred_region
      %s673 = ssub.s32 %s10, 2
      // Predicated region
      $region45: #{patch_splitting.1} parent=43 // pred_check
        %p674 = pneg %p128
      $region46: #{patch_splitting.1} parent=43 // pred_check_branch
        %676 = sbr.rel (%p674) target = $region48
      $region47: #{patch_splitting.1} parent=43 // pred_region
        %s677 = smul.u32 8, %s16
        %p678 = scmp.lt.s32.totalorder %s677, 15
        %s679 = scalar_select %p678, %s677, 15
        %s680 = smul.addr %s679, 8
        %s681 = scalar_lea.vmem %s4, %s680
      $region48: #{patch_splitting.1} parent=43 // pred_fallthru
        _
    $region44: #{patch_splitting.1} parent=5 // pred_fallthru
      _
  $region6: #{patch_splitting.1} parent=0 // loop_footer
    %s14 = sadd.s32 1, %s10
  $region7: #{patch_splitting.1} parent=0 // loop_footer_branch
    %9 = sbr.rel target = $region3
  $region8: #{patch_splitting.1} parent=0 // loop_exit
    _

</llo_original>
